<compile_context>
chip_gen: v7x
topology: tpu7x:2x2x1
jax: 0.10.0
libtpu: 0.0.40
codegen_flags: <defaults>
</compile_context>

<pallas_src>
import jax
import jax.numpy as jnp
from jax.experimental import pallas as pl
from jax.experimental.pallas import tpu as pltpu


def _temporal_approx_kernel(x_ref, w_ref, o_ref):
    """Whole problem resident in VMEM; emits the final (X, T, B, Cout) layout.

    x_ref: (X, T, B, Cin)        input, native layout
    w_ref: (modes2, Cin, Cout)   Re(weights1), native layout
    o_ref: (X, T, B, Cout)       final output (== torch `out`)
    """
    X, T, B, _ = x_ref.shape
    modes2, cin, cout = w_ref.shape

    xs = x_ref[:, :modes2, :, :]          # (X, m2, B, Cin) -- leading-axis slice
    w = w_ref[...]                        # (m2, Cin, Cout)

    # out[x,t,b,o] = sum_i x[x,t,b,i] * w[t,i,o]
    # Unrolled VPU MAC over the small static channel axis: each term is a
    # lane-broadcast of a width-1 input slice times a (leading/sublane)
    # broadcast weight row.
    acc = xs[:, :, :, 0:1] * w[None, :, 0:1, :]                  # (X, m2, B, Cout)
    for i in range(1, cin):
        acc = acc + xs[:, :, :, i:i + 1] * w[None, :, i:i + 1, :]

    o_ref[:, :modes2, :, :] = acc
    if modes2 < T:                        # zero tail along the time axis
        o_ref[:, modes2:, :, :] = jnp.zeros((X, T - modes2, B, cout), o_ref.dtype)


def temporal_approximation_block(x, weights1_real, *, modes1, modes2):
    """x: (X, T, B, Cin) float32; weights1_real: (modes2, Cin, Cout) float32."""
    X, T, B, Cin = x.shape
    m2, Cin_w, Cout = weights1_real.shape
    assert X == modes1, "torch assignment requires x.size(0) == modes1"
    assert Cout == Cin and Cin_w == Cin, "torch assignment requires out_channels == in_channels"
    assert m2 == modes2 and modes2 <= T

    # Single un-gridded call: whole arrays live in VMEM, no pipeline machinery.
    return pl.pallas_call(
        _temporal_approx_kernel,
        out_shape=jax.ShapeDtypeStruct((modes1, T, B, Cout), jnp.float32),
        in_specs=[
            pl.BlockSpec(memory_space=pltpu.MemorySpace.VMEM),
            pl.BlockSpec(memory_space=pltpu.MemorySpace.VMEM),
        ],
        out_specs=pl.BlockSpec(memory_space=pltpu.MemorySpace.VMEM),
    )(x, weights1_real)


if __name__ == "__main__":
    # Small shapes consistent with the module's forward.
    in_channels = 4
    out_channels = 4
    modes1 = 8          # == x.size(0)
    modes2 = 4          # number of retained temporal modes (<= T)
    T = 8               # x.size(1)
    B = 2               # x.size(2)

    key = jax.random.PRNGKey(0)
    kx, kwr, kwi = jax.random.split(key, 3)

    x = jax.random.normal(kx, (modes1, T, B, in_channels), dtype=jnp.float32)

    # weights1 = scale * torch.rand(modes2, Cin, Cout, dtype=cfloat)
    scale = 1.0 / (in_channels * out_channels)
    w_real = scale * jax.random.uniform(
        kwr, (modes2, in_channels, out_channels), dtype=jnp.float32)
    w_imag = scale * jax.random.uniform(
        kwi, (modes2, in_channels, out_channels), dtype=jnp.float32)
    del w_imag  # imaginary part cannot reach the real-dtype output (see TODO)

    out = temporal_approximation_block(x, w_real, modes1=modes1, modes2=modes2)
    out = jax.block_until_ready(out)

    # Pure-JAX reference of the torch forward (real part).
    ref = jnp.zeros((modes1, T, B, in_channels), jnp.float32)
    ref = ref.at[:, :modes2].set(
        jnp.einsum("xtbi,tio->xtbo", x[:, :modes2], w_real)
    )
    assert out.shape == (modes1, T, B, in_channels)
    assert jnp.allclose(out, ref, atol=1e-5, rtol=1e-5)

    print("KERNEL_OK")
</pallas_src>

<mosaic_0001>
module attributes {stable_mosaic.version = 11 : i64} {
  func.func @_temporal_approx_kernel(%arg0: memref<8x8x2x4xf32, #tpu.memory_space<vmem>>, %arg1: memref<4x4x4xf32, #tpu.memory_space<vmem>>, %arg2: memref<8x8x2x4xf32, #tpu.memory_space<vmem>>) attributes {dimension_semantics = [], scalar_prefetch = 0 : i64, scratch_operands = 0 : i64, tpu.core_type = #tpu.core_type<tc>} {
    %c0 = arith.constant 0 : index
    %c0_0 = arith.constant 0 : index
    %c0_1 = arith.constant 0 : index
    %c0_2 = arith.constant 0 : index
    %0 = vector.load %arg0[%c0, %c0_0, %c0_1, %c0_2] : memref<8x8x2x4xf32, #tpu.memory_space<vmem>>, vector<8x4x2x4xf32>
    %c0_3 = arith.constant 0 : index
    %c0_4 = arith.constant 0 : index
    %c0_5 = arith.constant 0 : index
    %1 = vector.load %arg1[%c0_3, %c0_4, %c0_5] : memref<4x4x4xf32, #tpu.memory_space<vmem>>, vector<4x4x4xf32>
    %2 = vector.extract_strided_slice %0 {offsets = [0, 0, 0, 0], sizes = [8, 4, 2, 1], strides = [1, 1, 1, 1]} : vector<8x4x2x4xf32> to vector<8x4x2x1xf32>
    %3 = vector.extract_strided_slice %1 {offsets = [0, 0, 0], sizes = [4, 1, 4], strides = [1, 1, 1]} : vector<4x4x4xf32> to vector<4x1x4xf32>
    %4 = vector.shape_cast %3 : vector<4x1x4xf32> to vector<1x4x1x4xf32>
    %5 = vector.broadcast %2 : vector<8x4x2x1xf32> to vector<8x4x2x4xf32>
    %6 = vector.broadcast %4 : vector<1x4x1x4xf32> to vector<8x4x2x4xf32>
    %7 = arith.mulf %5, %6 : vector<8x4x2x4xf32>
    %8 = vector.extract_strided_slice %0 {offsets = [0, 0, 0, 1], sizes = [8, 4, 2, 1], strides = [1, 1, 1, 1]} : vector<8x4x2x4xf32> to vector<8x4x2x1xf32>
    %9 = vector.extract_strided_slice %1 {offsets = [0, 1, 0], sizes = [4, 1, 4], strides = [1, 1, 1]} : vector<4x4x4xf32> to vector<4x1x4xf32>
    %10 = vector.shape_cast %9 : vector<4x1x4xf32> to vector<1x4x1x4xf32>
    %11 = vector.broadcast %8 : vector<8x4x2x1xf32> to vector<8x4x2x4xf32>
    %12 = vector.broadcast %10 : vector<1x4x1x4xf32> to vector<8x4x2x4xf32>
    %13 = arith.mulf %11, %12 : vector<8x4x2x4xf32>
    %14 = arith.addf %7, %13 : vector<8x4x2x4xf32>
    %15 = vector.extract_strided_slice %0 {offsets = [0, 0, 0, 2], sizes = [8, 4, 2, 1], strides = [1, 1, 1, 1]} : vector<8x4x2x4xf32> to vector<8x4x2x1xf32>
    %16 = vector.extract_strided_slice %1 {offsets = [0, 2, 0], sizes = [4, 1, 4], strides = [1, 1, 1]} : vector<4x4x4xf32> to vector<4x1x4xf32>
    %17 = vector.shape_cast %16 : vector<4x1x4xf32> to vector<1x4x1x4xf32>
    %18 = vector.broadcast %15 : vector<8x4x2x1xf32> to vector<8x4x2x4xf32>
    %19 = vector.broadcast %17 : vector<1x4x1x4xf32> to vector<8x4x2x4xf32>
    %20 = arith.mulf %18, %19 : vector<8x4x2x4xf32>
    %21 = arith.addf %14, %20 : vector<8x4x2x4xf32>
    %22 = vector.extract_strided_slice %0 {offsets = [0, 0, 0, 3], sizes = [8, 4, 2, 1], strides = [1, 1, 1, 1]} : vector<8x4x2x4xf32> to vector<8x4x2x1xf32>
    %23 = vector.extract_strided_slice %1 {offsets = [0, 3, 0], sizes = [4, 1, 4], strides = [1, 1, 1]} : vector<4x4x4xf32> to vector<4x1x4xf32>
    %24 = vector.shape_cast %23 : vector<4x1x4xf32> to vector<1x4x1x4xf32>
    %25 = vector.broadcast %22 : vector<8x4x2x1xf32> to vector<8x4x2x4xf32>
    %26 = vector.broadcast %24 : vector<1x4x1x4xf32> to vector<8x4x2x4xf32>
    %27 = arith.mulf %25, %26 : vector<8x4x2x4xf32>
    %28 = arith.addf %21, %27 : vector<8x4x2x4xf32>
    %c0_6 = arith.constant 0 : index
    %c0_7 = arith.constant 0 : index
    %c0_8 = arith.constant 0 : index
    %c0_9 = arith.constant 0 : index
    %29 = vector.load %arg2[%c0_6, %c0_7, %c0_8, %c0_9] : memref<8x8x2x4xf32, #tpu.memory_space<vmem>>, vector<8x4x2x4xf32>
    tpu.vector_store %arg2[%c0_6, %c0_7, %c0_8, %c0_9], %28 {strides = array<i32>} : memref<8x8x2x4xf32, #tpu.memory_space<vmem>>, vector<8x4x2x4xf32>,
    %cst = arith.constant 0.000000e+00 : f32
    %30 = vector.broadcast %cst : f32 to vector<8x4x2x4xf32>
    %c0_10 = arith.constant 0 : index
    %c4 = arith.constant 4 : index
    %c0_11 = arith.constant 0 : index
    %c0_12 = arith.constant 0 : index
    %31 = vector.load %arg2[%c0_10, %c4, %c0_11, %c0_12] : memref<8x8x2x4xf32, #tpu.memory_space<vmem>>, vector<8x4x2x4xf32>
    tpu.vector_store %arg2[%c0_10, %c4, %c0_11, %c0_12], %30 {strides = array<i32>} : memref<8x8x2x4xf32, #tpu.memory_space<vmem>>, vector<8x4x2x4xf32>,
    return
  }
}

</mosaic_0001>

<llo_original>
// kernel: tpu_custom_call.1
$region0: #{tpu_custom_call.1}
  #allocation0 [shape = 'u32[]', space=smem, size = 0x4, offset = 0x4, fixed_abs, tag = 'smem constant byte address 0x4 - core index']
  #allocation1 [shape = 'u32[144,128]{1,0:T(1,128)}', space=vmem, size = 0x12000, scoped, tag = 'internal scratch']
  %s0 = inlined_call_operand.vmem [shape: f32[8,8,2,4], index: 0, kind: input, shape index: {}]
  %s1 = inlined_call_operand.vmem [shape: f32[4,4,4], index: 1, kind: input, shape index: {}]
  %s2 = inlined_call_operand.vmem [shape: f32[8,8,2,4], index: 2, kind: output, shape index: {}]
  %s3 = sld [smem:[#allocation0]]
  $region18: #{tpu_custom_call.1} parent=0
    _
  %s5 = ssub.s32 1, %s3
  %s6 = scalar_select 0, %s5, %s3
  // Predicated region
  $region2: #{tpu_custom_call.1} parent=0 // pred_check
    _
  $region3: #{tpu_custom_call.1} parent=0 // pred_check_branch
    %8 = sbr.rel (0) target = $region5
  $region4: #{tpu_custom_call.1} parent=0 // pred_region
    _
  $region5: #{tpu_custom_call.1} parent=0 // pred_fallthru
    _
  // Predicated region
  $region6: #{tpu_custom_call.1} parent=0 // pred_check
    _
  $region7: #{tpu_custom_call.1} parent=0 // pred_check_branch
    %10 = sbr.rel (0) target = $region9
  $region8: #{tpu_custom_call.1} parent=0 // pred_region
    _
  $region9: #{tpu_custom_call.1} parent=0 // pred_fallthru
    _
  %v11 = vld [vmem:[%s0] sm:$0x3]
  %v12 = vld [vmem:[%s0 + $0x2] sm:$0x3]
  %v13 = vld [vmem:[%s0 + $0x4] sm:$0x3]
  %v14 = vld [vmem:[%s0 + $0x6] sm:$0x3]
  %v15 = vld [vmem:[%s0 + $0x10] sm:$0x3]
  %v16 = vld [vmem:[%s0 + $0x12] sm:$0x3]
  %v17 = vld [vmem:[%s0 + $0x14] sm:$0x3]
  %v18 = vld [vmem:[%s0 + $0x16] sm:$0x3]
  %v19 = vld [vmem:[%s0 + $0x20] sm:$0x3]
  %v20 = vld [vmem:[%s0 + $0x22] sm:$0x3]
  %v21 = vld [vmem:[%s0 + $0x24] sm:$0x3]
  %v22 = vld [vmem:[%s0 + $0x26] sm:$0x3]
  %v23 = vld [vmem:[%s0 + $0x30] sm:$0x3]
  %v24 = vld [vmem:[%s0 + $0x32] sm:$0x3]
  %v25 = vld [vmem:[%s0 + $0x34] sm:$0x3]
  %v26 = vld [vmem:[%s0 + $0x36] sm:$0x3]
  %v27 = vld [vmem:[%s0 + $0x40] sm:$0x3]
  %v28 = vld [vmem:[%s0 + $0x42] sm:$0x3]
  %v29 = vld [vmem:[%s0 + $0x44] sm:$0x3]
  %v30 = vld [vmem:[%s0 + $0x46] sm:$0x3]
  %v31 = vld [vmem:[%s0 + $0x50] sm:$0x3]
  %v32 = vld [vmem:[%s0 + $0x52] sm:$0x3]
  %v33 = vld [vmem:[%s0 + $0x54] sm:$0x3]
  %v34 = vld [vmem:[%s0 + $0x56] sm:$0x3]
  %v35 = vld [vmem:[%s0 + $0x60] sm:$0x3]
  %v36 = vld [vmem:[%s0 + $0x62] sm:$0x3]
  %v37 = vld [vmem:[%s0 + $0x64] sm:$0x3]
  %v38 = vld [vmem:[%s0 + $0x66] sm:$0x3]
  %v39 = vld [vmem:[%s0 + $0x70] sm:$0x3]
  %v40 = vld [vmem:[%s0 + $0x72] sm:$0x3]
  %v41 = vld [vmem:[%s0 + $0x74] sm:$0x3]
  %v42 = vld [vmem:[%s0 + $0x76] sm:$0x3]
  %v43 = vld [vmem:[%s1] sm:$0xf]
  %v44 = vld [vmem:[%s1 + $0x4] sm:$0xf]
  %v45 = vld [vmem:[%s1 + $0x8] sm:$0xf]
  %v46 = vld [vmem:[%s1 + $0xc] sm:$0xf]
  %48 = vset.pattern.permute.xlu0 0
  %49 = vperm.xlu0 %48, %v11
  %v50 = vpop.permute.xlu0 %49
  %53 = vset.pattern.permute.xlu0 0
  %54 = vperm.xlu0 %53, %v12
  %v55 = vpop.permute.xlu0 %54
  %58 = vset.pattern.permute.xlu0 0
  %59 = vperm.xlu0 %58, %v13
  %v60 = vpop.permute.xlu0 %59
  %63 = vset.pattern.permute.xlu0 0
  %64 = vperm.xlu0 %63, %v14
  %v65 = vpop.permute.xlu0 %64
  %68 = vset.pattern.permute.xlu0 0
  %69 = vperm.xlu0 %68, %v15
  %v70 = vpop.permute.xlu0 %69
  %73 = vset.pattern.permute.xlu0 0
  %74 = vperm.xlu0 %73, %v16
  %v75 = vpop.permute.xlu0 %74
  %78 = vset.pattern.permute.xlu0 0
  %79 = vperm.xlu0 %78, %v17
  %v80 = vpop.permute.xlu0 %79
  %83 = vset.pattern.permute.xlu0 0
  %84 = vperm.xlu0 %83, %v18
  %v85 = vpop.permute.xlu0 %84
  %88 = vset.pattern.permute.xlu0 0
  %89 = vperm.xlu0 %88, %v19
  %v90 = vpop.permute.xlu0 %89
  %93 = vset.pattern.permute.xlu0 0
  %94 = vperm.xlu0 %93, %v20
  %v95 = vpop.permute.xlu0 %94
  %98 = vset.pattern.permute.xlu0 0
  %99 = vperm.xlu0 %98, %v21
  %v100 = vpop.permute.xlu0 %99
  %103 = vset.pattern.permute.xlu0 0
  %104 = vperm.xlu0 %103, %v22
  %v105 = vpop.permute.xlu0 %104
  %108 = vset.pattern.permute.xlu0 0
  %109 = vperm.xlu0 %108, %v23
  %v110 = vpop.permute.xlu0 %109
  %113 = vset.pattern.permute.xlu0 0
  %114 = vperm.xlu0 %113, %v24
  %v115 = vpop.permute.xlu0 %114
  %118 = vset.pattern.permute.xlu0 0
  %119 = vperm.xlu0 %118, %v25
  %v120 = vpop.permute.xlu0 %119
  %123 = vset.pattern.permute.xlu0 0
  %124 = vperm.xlu0 %123, %v26
  %v125 = vpop.permute.xlu0 %124
  %128 = vset.pattern.permute.xlu0 0
  %129 = vperm.xlu0 %128, %v27
  %v130 = vpop.permute.xlu0 %129
  %133 = vset.pattern.permute.xlu0 0
  %134 = vperm.xlu0 %133, %v28
  %v135 = vpop.permute.xlu0 %134
  %138 = vset.pattern.permute.xlu0 0
  %139 = vperm.xlu0 %138, %v29
  %v140 = vpop.permute.xlu0 %139
  %143 = vset.pattern.permute.xlu0 0
  %144 = vperm.xlu0 %143, %v30
  %v145 = vpop.permute.xlu0 %144
  %148 = vset.pattern.permute.xlu0 0
  %149 = vperm.xlu0 %148, %v31
  %v150 = vpop.permute.xlu0 %149
  %153 = vset.pattern.permute.xlu0 0
  %154 = vperm.xlu0 %153, %v32
  %v155 = vpop.permute.xlu0 %154
  %158 = vset.pattern.permute.xlu0 0
  %159 = vperm.xlu0 %158, %v33
  %v160 = vpop.permute.xlu0 %159
  %163 = vset.pattern.permute.xlu0 0
  %164 = vperm.xlu0 %163, %v34
  %v165 = vpop.permute.xlu0 %164
  %168 = vset.pattern.permute.xlu0 0
  %169 = vperm.xlu0 %168, %v35
  %v170 = vpop.permute.xlu0 %169
  %173 = vset.pattern.permute.xlu0 0
  %174 = vperm.xlu0 %173, %v36
  %v175 = vpop.permute.xlu0 %174
  %178 = vset.pattern.permute.xlu0 0
  %179 = vperm.xlu0 %178, %v37
  %v180 = vpop.permute.xlu0 %179
  %183 = vset.pattern.permute.xlu0 0
  %184 = vperm.xlu0 %183, %v38
  %v185 = vpop.permute.xlu0 %184
  %188 = vset.pattern.permute.xlu0 0
  %189 = vperm.xlu0 %188, %v39
  %v190 = vpop.permute.xlu0 %189
  %193 = vset.pattern.permute.xlu0 0
  %194 = vperm.xlu0 %193, %v40
  %v195 = vpop.permute.xlu0 %194
  %198 = vset.pattern.permute.xlu0 0
  %199 = vperm.xlu0 %198, %v41
  %v200 = vpop.permute.xlu0 %199
  %203 = vset.pattern.permute.xlu0 0
  %204 = vperm.xlu0 %203, %v42
  %v205 = vpop.permute.xlu0 %204
  %v207 = vlaneseq
  %v208 = vshrl.u32 %v207, 7
  %v209 = vsub.s32 0, %v208
  %v210 = vrot.slane %v43, %v209
  %v211 = vlaneseq
  %v212 = vshrl.u32 %v211, 7
  %v213 = vsub.s32 0, %v212
  %v214 = vrot.slane %v44, %v213
  %v215 = vlaneseq
  %v216 = vshrl.u32 %v215, 7
  %v217 = vsub.s32 0, %v216
  %v218 = vrot.slane %v45, %v217
  %v219 = vlaneseq
  %v220 = vshrl.u32 %v219, 7
  %v221 = vsub.s32 0, %v220
  %v222 = vrot.slane %v46, %v221
  %v223 = vmul.f32 %v50, %v210
  %v224 = vmul.f32 %v55, %v214
  %v225 = vmul.f32 %v60, %v218
  %v226 = vmul.f32 %v65, %v222
  %v227 = vmul.f32 %v70, %v210
  %v228 = vmul.f32 %v75, %v214
  %v229 = vmul.f32 %v80, %v218
  %v230 = vmul.f32 %v85, %v222
  %v231 = vmul.f32 %v90, %v210
  %v232 = vmul.f32 %v95, %v214
  %v233 = vmul.f32 %v100, %v218
  %v234 = vmul.f32 %v105, %v222
  %v235 = vmul.f32 %v110, %v210
  %v236 = vmul.f32 %v115, %v214
  %v237 = vmul.f32 %v120, %v218
  %v238 = vmul.f32 %v125, %v222
  %v239 = vmul.f32 %v130, %v210
  %v240 = vmul.f32 %v135, %v214
  %v241 = vmul.f32 %v140, %v218
  %v242 = vmul.f32 %v145, %v222
  %v243 = vmul.f32 %v150, %v210
  %v244 = vmul.f32 %v155, %v214
  %v245 = vmul.f32 %v160, %v218
  %v246 = vmul.f32 %v165, %v222
  %v247 = vmul.f32 %v170, %v210
  %v248 = vmul.f32 %v175, %v214
  %v249 = vmul.f32 %v180, %v218
  %v250 = vmul.f32 %v185, %v222
  %v251 = vmul.f32 %v190, %v210
  %v252 = vmul.f32 %v195, %v214
  %v253 = vmul.f32 %v200, %v218
  %v254 = vmul.f32 %v205, %v222
  %255 = vset.pattern.permute.xlu0 1
  %256 = vperm.xlu0 %255, %v11
  %v257 = vpop.permute.xlu0 %256
  %259 = vset.pattern.permute.xlu0 1
  %260 = vperm.xlu0 %259, %v12
  %v261 = vpop.permute.xlu0 %260
  %263 = vset.pattern.permute.xlu0 1
  %264 = vperm.xlu0 %263, %v13
  %v265 = vpop.permute.xlu0 %264
  %267 = vset.pattern.permute.xlu0 1
  %268 = vperm.xlu0 %267, %v14
  %v269 = vpop.permute.xlu0 %268
  %271 = vset.pattern.permute.xlu0 1
  %272 = vperm.xlu0 %271, %v15
  %v273 = vpop.permute.xlu0 %272
  %275 = vset.pattern.permute.xlu0 1
  %276 = vperm.xlu0 %275, %v16
  %v277 = vpop.permute.xlu0 %276
  %279 = vset.pattern.permute.xlu0 1
  %280 = vperm.xlu0 %279, %v17
  %v281 = vpop.permute.xlu0 %280
  %283 = vset.pattern.permute.xlu0 1
  %284 = vperm.xlu0 %283, %v18
  %v285 = vpop.permute.xlu0 %284
  %287 = vset.pattern.permute.xlu0 1
  %288 = vperm.xlu0 %287, %v19
  %v289 = vpop.permute.xlu0 %288
  %291 = vset.pattern.permute.xlu0 1
  %292 = vperm.xlu0 %291, %v20
  %v293 = vpop.permute.xlu0 %292
  %295 = vset.pattern.permute.xlu0 1
  %296 = vperm.xlu0 %295, %v21
  %v297 = vpop.permute.xlu0 %296
  %299 = vset.pattern.permute.xlu0 1
  %300 = vperm.xlu0 %299, %v22
  %v301 = vpop.permute.xlu0 %300
  %303 = vset.pattern.permute.xlu0 1
  %304 = vperm.xlu0 %303, %v23
  %v305 = vpop.permute.xlu0 %304
  %307 = vset.pattern.permute.xlu0 1
  %308 = vperm.xlu0 %307, %v24
  %v309 = vpop.permute.xlu0 %308
  %311 = vset.pattern.permute.xlu0 1
  %312 = vperm.xlu0 %311, %v25
  %v313 = vpop.permute.xlu0 %312
  %315 = vset.pattern.permute.xlu0 1
  %316 = vperm.xlu0 %315, %v26
  %v317 = vpop.permute.xlu0 %316
  %319 = vset.pattern.permute.xlu0 1
  %320 = vperm.xlu0 %319, %v27
  %v321 = vpop.permute.xlu0 %320
  %323 = vset.pattern.permute.xlu0 1
  %324 = vperm.xlu0 %323, %v28
  %v325 = vpop.permute.xlu0 %324
  %327 = vset.pattern.permute.xlu0 1
  %328 = vperm.xlu0 %327, %v29
  %v329 = vpop.permute.xlu0 %328
  %331 = vset.pattern.permute.xlu0 1
  %332 = vperm.xlu0 %331, %v30
  %v333 = vpop.permute.xlu0 %332
  %335 = vset.pattern.permute.xlu0 1
  %336 = vperm.xlu0 %335, %v31
  %v337 = vpop.permute.xlu0 %336
  %339 = vset.pattern.permute.xlu0 1
  %340 = vperm.xlu0 %339, %v32
  %v341 = vpop.permute.xlu0 %340
  %343 = vset.pattern.permute.xlu0 1
  %344 = vperm.xlu0 %343, %v33
  %v345 = vpop.permute.xlu0 %344
  %347 = vset.pattern.permute.xlu0 1
  %348 = vperm.xlu0 %347, %v34
  %v349 = vpop.permute.xlu0 %348
  %351 = vset.pattern.permute.xlu0 1
  %352 = vperm.xlu0 %351, %v35
  %v353 = vpop.permute.xlu0 %352
  %355 = vset.pattern.permute.xlu0 1
  %356 = vperm.xlu0 %355, %v36
  %v357 = vpop.permute.xlu0 %356
  %359 = vset.pattern.permute.xlu0 1
  %360 = vperm.xlu0 %359, %v37
  %v361 = vpop.permute.xlu0 %360
  %363 = vset.pattern.permute.xlu0 1
  %364 = vperm.xlu0 %363, %v38
  %v365 = vpop.permute.xlu0 %364
  %367 = vset.pattern.permute.xlu0 1
  %368 = vperm.xlu0 %367, %v39
  %v369 = vpop.permute.xlu0 %368
  %371 = vset.pattern.permute.xlu0 1
  %372 = vperm.xlu0 %371, %v40
  %v373 = vpop.permute.xlu0 %372
  %375 = vset.pattern.permute.xlu0 1
  %376 = vperm.xlu0 %375, %v41
  %v377 = vpop.permute.xlu0 %376
  %379 = vset.pattern.permute.xlu0 1
  %380 = vperm.xlu0 %379, %v42
  %v381 = vpop.permute.xlu0 %380
  %v383 = vlaneseq
  %v384 = vshrl.u32 %v383, 7
  %v385 = vsub.s32 1, %v384
  %v386 = vrot.slane %v43, %v385
  %v387 = vlaneseq
  %v388 = vshrl.u32 %v387, 7
  %v389 = vsub.s32 1, %v388
  %v390 = vrot.slane %v44, %v389
  %v391 = vlaneseq
  %v392 = vshrl.u32 %v391, 7
  %v393 = vsub.s32 1, %v392
  %v394 = vrot.slane %v45, %v393
  %v395 = vlaneseq
  %v396 = vshrl.u32 %v395, 7
  %v397 = vsub.s32 1, %v396
  %v398 = vrot.slane %v46, %v397
  %v399 = vmul.f32 %v257, %v386
  %v400 = vmul.f32 %v261, %v390
  %v401 = vmul.f32 %v265, %v394
  %v402 = vmul.f32 %v269, %v398
  %v403 = vmul.f32 %v273, %v386
  %v404 = vmul.f32 %v277, %v390
  %v405 = vmul.f32 %v281, %v394
  %v406 = vmul.f32 %v285, %v398
  %v407 = vmul.f32 %v289, %v386
  %v408 = vmul.f32 %v293, %v390
  %v409 = vmul.f32 %v297, %v394
  %v410 = vmul.f32 %v301, %v398
  %v411 = vmul.f32 %v305, %v386
  %v412 = vmul.f32 %v309, %v390
  %v413 = vmul.f32 %v313, %v394
  %v414 = vmul.f32 %v317, %v398
  %v415 = vmul.f32 %v321, %v386
  %v416 = vmul.f32 %v325, %v390
  %v417 = vmul.f32 %v329, %v394
  %v418 = vmul.f32 %v333, %v398
  %v419 = vmul.f32 %v337, %v386
  %v420 = vmul.f32 %v341, %v390
  %v421 = vmul.f32 %v345, %v394
  %v422 = vmul.f32 %v349, %v398
  %v423 = vmul.f32 %v353, %v386
  %v424 = vmul.f32 %v357, %v390
  %v425 = vmul.f32 %v361, %v394
  %v426 = vmul.f32 %v365, %v398
  %v427 = vmul.f32 %v369, %v386
  %v428 = vmul.f32 %v373, %v390
  %v429 = vmul.f32 %v377, %v394
  %v430 = vmul.f32 %v381, %v398
  %v431 = vadd.f32 %v223, %v399
  %v432 = vadd.f32 %v224, %v400
  %v433 = vadd.f32 %v225, %v401
  %v434 = vadd.f32 %v226, %v402
  %v435 = vadd.f32 %v227, %v403
  %v436 = vadd.f32 %v228, %v404
  %v437 = vadd.f32 %v229, %v405
  %v438 = vadd.f32 %v230, %v406
  %v439 = vadd.f32 %v231, %v407
  %v440 = vadd.f32 %v232, %v408
  %v441 = vadd.f32 %v233, %v409
  %v442 = vadd.f32 %v234, %v410
  %v443 = vadd.f32 %v235, %v411
  %v444 = vadd.f32 %v236, %v412
  %v445 = vadd.f32 %v237, %v413
  %v446 = vadd.f32 %v238, %v414
  %v447 = vadd.f32 %v239, %v415
  %v448 = vadd.f32 %v240, %v416
  %v449 = vadd.f32 %v241, %v417
  %v450 = vadd.f32 %v242, %v418
  %v451 = vadd.f32 %v243, %v419
  %v452 = vadd.f32 %v244, %v420
  %v453 = vadd.f32 %v245, %v421
  %v454 = vadd.f32 %v246, %v422
  %v455 = vadd.f32 %v247, %v423
  %v456 = vadd.f32 %v248, %v424
  %v457 = vadd.f32 %v249, %v425
  %v458 = vadd.f32 %v250, %v426
  %v459 = vadd.f32 %v251, %v427
  %v460 = vadd.f32 %v252, %v428
  %v461 = vadd.f32 %v253, %v429
  %v462 = vadd.f32 %v254, %v430
  %463 = vset.pattern.permute.xlu0 2
  %464 = vperm.xlu0 %463, %v11
  %v465 = vpop.permute.xlu0 %464
  %467 = vset.pattern.permute.xlu0 2
  %468 = vperm.xlu0 %467, %v12
  %v469 = vpop.permute.xlu0 %468
  %471 = vset.pattern.permute.xlu0 2
  %472 = vperm.xlu0 %471, %v13
  %v473 = vpop.permute.xlu0 %472
  %475 = vset.pattern.permute.xlu0 2
  %476 = vperm.xlu0 %475, %v14
  %v477 = vpop.permute.xlu0 %476
  %479 = vset.pattern.permute.xlu0 2
  %480 = vperm.xlu0 %479, %v15
  %v481 = vpop.permute.xlu0 %480
  %483 = vset.pattern.permute.xlu0 2
  %484 = vperm.xlu0 %483, %v16
  %v485 = vpop.permute.xlu0 %484
  %487 = vset.pattern.permute.xlu0 2
  %488 = vperm.xlu0 %487, %v17
  %v489 = vpop.permute.xlu0 %488
  %491 = vset.pattern.permute.xlu0 2
  %492 = vperm.xlu0 %491, %v18
  %v493 = vpop.permute.xlu0 %492
  %495 = vset.pattern.permute.xlu0 2
  %496 = vperm.xlu0 %495, %v19
  %v497 = vpop.permute.xlu0 %496
  %499 = vset.pattern.permute.xlu0 2
  %500 = vperm.xlu0 %499, %v20
  %v501 = vpop.permute.xlu0 %500
  %503 = vset.pattern.permute.xlu0 2
  %504 = vperm.xlu0 %503, %v21
  %v505 = vpop.permute.xlu0 %504
  %507 = vset.pattern.permute.xlu0 2
  %508 = vperm.xlu0 %507, %v22
  %v509 = vpop.permute.xlu0 %508
  %511 = vset.pattern.permute.xlu0 2
  %512 = vperm.xlu0 %511, %v23
  %v513 = vpop.permute.xlu0 %512
  %515 = vset.pattern.permute.xlu0 2
  %516 = vperm.xlu0 %515, %v24
  %v517 = vpop.permute.xlu0 %516
  %519 = vset.pattern.permute.xlu0 2
  %520 = vperm.xlu0 %519, %v25
  %v521 = vpop.permute.xlu0 %520
  %523 = vset.pattern.permute.xlu0 2
  %524 = vperm.xlu0 %523, %v26
  %v525 = vpop.permute.xlu0 %524
  %527 = vset.pattern.permute.xlu0 2
  %528 = vperm.xlu0 %527, %v27
  %v529 = vpop.permute.xlu0 %528
  %531 = vset.pattern.permute.xlu0 2
  %532 = vperm.xlu0 %531, %v28
  %v533 = vpop.permute.xlu0 %532
  %535 = vset.pattern.permute.xlu0 2
  %536 = vperm.xlu0 %535, %v29
  %v537 = vpop.permute.xlu0 %536
  %539 = vset.pattern.permute.xlu0 2
  %540 = vperm.xlu0 %539, %v30
  %v541 = vpop.permute.xlu0 %540
  %543 = vset.pattern.permute.xlu0 2
  %544 = vperm.xlu0 %543, %v31
  %v545 = vpop.permute.xlu0 %544
  %547 = vset.pattern.permute.xlu0 2
  %548 = vperm.xlu0 %547, %v32
  %v549 = vpop.permute.xlu0 %548
  %551 = vset.pattern.permute.xlu0 2
  %552 = vperm.xlu0 %551, %v33
  %v553 = vpop.permute.xlu0 %552
  %555 = vset.pattern.permute.xlu0 2
  %556 = vperm.xlu0 %555, %v34
  %v557 = vpop.permute.xlu0 %556
  %559 = vset.pattern.permute.xlu0 2
  %560 = vperm.xlu0 %559, %v35
  %v561 = vpop.permute.xlu0 %560
  %563 = vset.pattern.permute.xlu0 2
  %564 = vperm.xlu0 %563, %v36
  %v565 = vpop.permute.xlu0 %564
  %567 = vset.pattern.permute.xlu0 2
  %568 = vperm.xlu0 %567, %v37
  %v569 = vpop.permute.xlu0 %568
  %571 = vset.pattern.permute.xlu0 2
  %572 = vperm.xlu0 %571, %v38
  %v573 = vpop.permute.xlu0 %572
  %575 = vset.pattern.permute.xlu0 2
  %576 = vperm.xlu0 %575, %v39
  %v577 = vpop.permute.xlu0 %576
  %579 = vset.pattern.permute.xlu0 2
  %580 = vperm.xlu0 %579, %v40
  %v581 = vpop.permute.xlu0 %580
  %583 = vset.pattern.permute.xlu0 2
  %584 = vperm.xlu0 %583, %v41
  %v585 = vpop.permute.xlu0 %584
  %587 = vset.pattern.permute.xlu0 2
  %588 = vperm.xlu0 %587, %v42
  %v589 = vpop.permute.xlu0 %588
  %v591 = vlaneseq
  %v592 = vshrl.u32 %v591, 7
  %v593 = vsub.s32 2, %v592
  %v594 = vrot.slane %v43, %v593
  %v595 = vlaneseq
  %v596 = vshrl.u32 %v595, 7
  %v597 = vsub.s32 2, %v596
  %v598 = vrot.slane %v44, %v597
  %v599 = vlaneseq
  %v600 = vshrl.u32 %v599, 7
  %v601 = vsub.s32 2, %v600
  %v602 = vrot.slane %v45, %v601
  %v603 = vlaneseq
  %v604 = vshrl.u32 %v603, 7
  %v605 = vsub.s32 2, %v604
  %v606 = vrot.slane %v46, %v605
  %v607 = vmul.f32 %v465, %v594
  %v608 = vmul.f32 %v469, %v598
  %v609 = vmul.f32 %v473, %v602
  %v610 = vmul.f32 %v477, %v606
  %v611 = vmul.f32 %v481, %v594
  %v612 = vmul.f32 %v485, %v598
  %v613 = vmul.f32 %v489, %v602
  %v614 = vmul.f32 %v493, %v606
  %v615 = vmul.f32 %v497, %v594
  %v616 = vmul.f32 %v501, %v598
  %v617 = vmul.f32 %v505, %v602
  %v618 = vmul.f32 %v509, %v606
  %v619 = vmul.f32 %v513, %v594
  %v620 = vmul.f32 %v517, %v598
  %v621 = vmul.f32 %v521, %v602
  %v622 = vmul.f32 %v525, %v606
  %v623 = vmul.f32 %v529, %v594
  %v624 = vmul.f32 %v533, %v598
  %v625 = vmul.f32 %v537, %v602
  %v626 = vmul.f32 %v541, %v606
  %v627 = vmul.f32 %v545, %v594
  %v628 = vmul.f32 %v549, %v598
  %v629 = vmul.f32 %v553, %v602
  %v630 = vmul.f32 %v557, %v606
  %v631 = vmul.f32 %v561, %v594
  %v632 = vmul.f32 %v565, %v598
  %v633 = vmul.f32 %v569, %v602
  %v634 = vmul.f32 %v573, %v606
  %v635 = vmul.f32 %v577, %v594
  %v636 = vmul.f32 %v581, %v598
  %v637 = vmul.f32 %v585, %v602
  %v638 = vmul.f32 %v589, %v606
  %v639 = vadd.f32 %v431, %v607
  %v640 = vadd.f32 %v432, %v608
  %v641 = vadd.f32 %v433, %v609
  %v642 = vadd.f32 %v434, %v610
  %v643 = vadd.f32 %v435, %v611
  %v644 = vadd.f32 %v436, %v612
  %v645 = vadd.f32 %v437, %v613
  %v646 = vadd.f32 %v438, %v614
  %v647 = vadd.f32 %v439, %v615
  %v648 = vadd.f32 %v440, %v616
  %v649 = vadd.f32 %v441, %v617
  %v650 = vadd.f32 %v442, %v618
  %v651 = vadd.f32 %v443, %v619
  %v652 = vadd.f32 %v444, %v620
  %v653 = vadd.f32 %v445, %v621
  %v654 = vadd.f32 %v446, %v622
  %v655 = vadd.f32 %v447, %v623
  %v656 = vadd.f32 %v448, %v624
  %v657 = vadd.f32 %v449, %v625
  %v658 = vadd.f32 %v450, %v626
  %v659 = vadd.f32 %v451, %v627
  %v660 = vadd.f32 %v452, %v628
  %v661 = vadd.f32 %v453, %v629
  %v662 = vadd.f32 %v454, %v630
  %v663 = vadd.f32 %v455, %v631
  %v664 = vadd.f32 %v456, %v632
  %v665 = vadd.f32 %v457, %v633
  %v666 = vadd.f32 %v458, %v634
  %v667 = vadd.f32 %v459, %v635
  %v668 = vadd.f32 %v460, %v636
  %v669 = vadd.f32 %v461, %v637
  %v670 = vadd.f32 %v462, %v638
  %671 = vset.pattern.permute.xlu0 3
  %672 = vperm.xlu0 %671, %v11
  %v673 = vpop.permute.xlu0 %672
  %675 = vset.pattern.permute.xlu0 3
  %676 = vperm.xlu0 %675, %v12
  %v677 = vpop.permute.xlu0 %676
  %679 = vset.pattern.permute.xlu0 3
  %680 = vperm.xlu0 %679, %v13
  %v681 = vpop.permute.xlu0 %680
  %683 = vset.pattern.permute.xlu0 3
  %684 = vperm.xlu0 %683, %v14
  %v685 = vpop.permute.xlu0 %684
  %687 = vset.pattern.permute.xlu0 3
  %688 = vperm.xlu0 %687, %v15
  %v689 = vpop.permute.xlu0 %688
  %691 = vset.pattern.permute.xlu0 3
  %692 = vperm.xlu0 %691, %v16
  %v693 = vpop.permute.xlu0 %692
  %695 = vset.pattern.permute.xlu0 3
  %696 = vperm.xlu0 %695, %v17
  %v697 = vpop.permute.xlu0 %696
  %699 = vset.pattern.permute.xlu0 3
  %700 = vperm.xlu0 %699, %v18
  %v701 = vpop.permute.xlu0 %700
  %703 = vset.pattern.permute.xlu0 3
  %704 = vperm.xlu0 %703, %v19
  %v705 = vpop.permute.xlu0 %704
  %707 = vset.pattern.permute.xlu0 3
  %708 = vperm.xlu0 %707, %v20
  %v709 = vpop.permute.xlu0 %708
  %711 = vset.pattern.permute.xlu0 3
  %712 = vperm.xlu0 %711, %v21
  %v713 = vpop.permute.xlu0 %712
  %715 = vset.pattern.permute.xlu0 3
  %716 = vperm.xlu0 %715, %v22
  %v717 = vpop.permute.xlu0 %716
  %719 = vset.pattern.permute.xlu0 3
  %720 = vperm.xlu0 %719, %v23
  %v721 = vpop.permute.xlu0 %720
  %723 = vset.pattern.permute.xlu0 3
  %724 = vperm.xlu0 %723, %v24
  %v725 = vpop.permute.xlu0 %724
  %727 = vset.pattern.permute.xlu0 3
  %728 = vperm.xlu0 %727, %v25
  %v729 = vpop.permute.xlu0 %728
  %731 = vset.pattern.permute.xlu0 3
  %732 = vperm.xlu0 %731, %v26
  %v733 = vpop.permute.xlu0 %732
  %735 = vset.pattern.permute.xlu0 3
  %736 = vperm.xlu0 %735, %v27
  %v737 = vpop.permute.xlu0 %736
  %739 = vset.pattern.permute.xlu0 3
  %740 = vperm.xlu0 %739, %v28
  %v741 = vpop.permute.xlu0 %740
  %743 = vset.pattern.permute.xlu0 3
  %744 = vperm.xlu0 %743, %v29
  %v745 = vpop.permute.xlu0 %744
  %747 = vset.pattern.permute.xlu0 3
  %748 = vperm.xlu0 %747, %v30
  %v749 = vpop.permute.xlu0 %748
  %751 = vset.pattern.permute.xlu0 3
  %752 = vperm.xlu0 %751, %v31
  %v753 = vpop.permute.xlu0 %752
  %755 = vset.pattern.permute.xlu0 3
  %756 = vperm.xlu0 %755, %v32
  %v757 = vpop.permute.xlu0 %756
  %759 = vset.pattern.permute.xlu0 3
  %760 = vperm.xlu0 %759, %v33
  %v761 = vpop.permute.xlu0 %760
  %763 = vset.pattern.permute.xlu0 3
  %764 = vperm.xlu0 %763, %v34
  %v765 = vpop.permute.xlu0 %764
  %767 = vset.pattern.permute.xlu0 3
  %768 = vperm.xlu0 %767, %v35
  %v769 = vpop.permute.xlu0 %768
  %771 = vset.pattern.permute.xlu0 3
  %772 = vperm.xlu0 %771, %v36
  %v773 = vpop.permute.xlu0 %772
  %775 = vset.pattern.permute.xlu0 3
  %776 = vperm.xlu0 %775, %v37
  %v777 = vpop.permute.xlu0 %776
  %779 = vset.pattern.permute.xlu0 3
  %780 = vperm.xlu0 %779, %v38
  %v781 = vpop.permute.xlu0 %780
  %783 = vset.pattern.permute.xlu0 3
  %784 = vperm.xlu0 %783, %v39
  %v785 = vpop.permute.xlu0 %784
  %787 = vset.pattern.permute.xlu0 3
  %788 = vperm.xlu0 %787, %v40
  %v789 = vpop.permute.xlu0 %788
  %791 = vset.pattern.permute.xlu0 3
  %792 = vperm.xlu0 %791, %v41
  %v793 = vpop.permute.xlu0 %792
  %795 = vset.pattern.permute.xlu0 3
  %796 = vperm.xlu0 %795, %v42
  %v797 = vpop.permute.xlu0 %796
  %v799 = vlaneseq
  %v800 = vshrl.u32 %v799, 7
  %v801 = vsub.s32 3, %v800
  %v802 = vrot.slane %v43, %v801
  %v803 = vlaneseq
  %v804 = vshrl.u32 %v803, 7
  %v805 = vsub.s32 3, %v804
  %v806 = vrot.slane %v44, %v805
  %v807 = vlaneseq
  %v808 = vshrl.u32 %v807, 7
  %v809 = vsub.s32 3, %v808
  %v810 = vrot.slane %v45, %v809
  %v811 = vlaneseq
  %v812 = vshrl.u32 %v811, 7
  %v813 = vsub.s32 3, %v812
  %v814 = vrot.slane %v46, %v813
  %v815 = vmul.f32 %v673, %v802
  %v816 = vmul.f32 %v677, %v806
  %v817 = vmul.f32 %v681, %v810
  %v818 = vmul.f32 %v685, %v814
  %v819 = vmul.f32 %v689, %v802
  %v820 = vmul.f32 %v693, %v806
  %v821 = vmul.f32 %v697, %v810
  %v822 = vmul.f32 %v701, %v814
  %v823 = vmul.f32 %v705, %v802
  %v824 = vmul.f32 %v709, %v806
  %v825 = vmul.f32 %v713, %v810
  %v826 = vmul.f32 %v717, %v814
  %v827 = vmul.f32 %v721, %v802
  %v828 = vmul.f32 %v725, %v806
  %v829 = vmul.f32 %v729, %v810
  %v830 = vmul.f32 %v733, %v814
  %v831 = vmul.f32 %v737, %v802
  %v832 = vmul.f32 %v741, %v806
  %v833 = vmul.f32 %v745, %v810
  %v834 = vmul.f32 %v749, %v814
  %v835 = vmul.f32 %v753, %v802
  %v836 = vmul.f32 %v757, %v806
  %v837 = vmul.f32 %v761, %v810
  %v838 = vmul.f32 %v765, %v814
  %v839 = vmul.f32 %v769, %v802
  %v840 = vmul.f32 %v773, %v806
  %v841 = vmul.f32 %v777, %v810
  %v842 = vmul.f32 %v781, %v814
  %v843 = vmul.f32 %v785, %v802
  %v844 = vmul.f32 %v789, %v806
  %v845 = vmul.f32 %v793, %v810
  %v846 = vmul.f32 %v797, %v814
  %v847 = vadd.f32 %v639, %v815
  %v848 = vadd.f32 %v640, %v816
  %v849 = vadd.f32 %v641, %v817
  %v850 = vadd.f32 %v642, %v818
  %v851 = vadd.f32 %v643, %v819
  %v852 = vadd.f32 %v644, %v820
  %v853 = vadd.f32 %v645, %v821
  %v854 = vadd.f32 %v646, %v822
  %v855 = vadd.f32 %v647, %v823
  %v856 = vadd.f32 %v648, %v824
  %v857 = vadd.f32 %v649, %v825
  %v858 = vadd.f32 %v650, %v826
  %v859 = vadd.f32 %v651, %v827
  %v860 = vadd.f32 %v652, %v828
  %v861 = vadd.f32 %v653, %v829
  %v862 = vadd.f32 %v654, %v830
  %v863 = vadd.f32 %v655, %v831
  %v864 = vadd.f32 %v656, %v832
  %v865 = vadd.f32 %v657, %v833
  %v866 = vadd.f32 %v658, %v834
  %v867 = vadd.f32 %v659, %v835
  %v868 = vadd.f32 %v660, %v836
  %v869 = vadd.f32 %v661, %v837
  %v870 = vadd.f32 %v662, %v838
  %v871 = vadd.f32 %v663, %v839
  %v872 = vadd.f32 %v664, %v840
  %v873 = vadd.f32 %v665, %v841
  %v874 = vadd.f32 %v666, %v842
  %v875 = vadd.f32 %v667, %v843
  %v876 = vadd.f32 %v668, %v844
  %v877 = vadd.f32 %v669, %v845
  %v878 = vadd.f32 %v670, %v846
  %vm879 = vcmask 25600
  %880 = vst.msk [vmem:[%s2] sm:$0x3] %vm879, %v847
  %881 = vst.msk [vmem:[%s2 + $0x2] sm:$0x3] %vm879, %v848
  %882 = vst.msk [vmem:[%s2 + $0x4] sm:$0x3] %vm879, %v849
  %883 = vst.msk [vmem:[%s2 + $0x6] sm:$0x3] %vm879, %v850
  %884 = vst.msk [vmem:[%s2 + $0x10] sm:$0x3] %vm879, %v851
  %885 = vst.msk [vmem:[%s2 + $0x12] sm:$0x3] %vm879, %v852
  %886 = vst.msk [vmem:[%s2 + $0x14] sm:$0x3] %vm879, %v853
  %887 = vst.msk [vmem:[%s2 + $0x16] sm:$0x3] %vm879, %v854
  %888 = vst.msk [vmem:[%s2 + $0x20] sm:$0x3] %vm879, %v855
  %889 = vst.msk [vmem:[%s2 + $0x22] sm:$0x3] %vm879, %v856
  %890 = vst.msk [vmem:[%s2 + $0x24] sm:$0x3] %vm879, %v857
  %891 = vst.msk [vmem:[%s2 + $0x26] sm:$0x3] %vm879, %v858
  %892 = vst.msk [vmem:[%s2 + $0x30] sm:$0x3] %vm879, %v859
  %893 = vst.msk [vmem:[%s2 + $0x32] sm:$0x3] %vm879, %v860
  %894 = vst.msk [vmem:[%s2 + $0x34] sm:$0x3] %vm879, %v861
  %895 = vst.msk [vmem:[%s2 + $0x36] sm:$0x3] %vm879, %v862
  %896 = vst.msk [vmem:[%s2 + $0x40] sm:$0x3] %vm879, %v863
  %897 = vst.msk [vmem:[%s2 + $0x42] sm:$0x3] %vm879, %v864
  %898 = vst.msk [vmem:[%s2 + $0x44] sm:$0x3] %vm879, %v865
  %899 = vst.msk [vmem:[%s2 + $0x46] sm:$0x3] %vm879, %v866
  %900 = vst.msk [vmem:[%s2 + $0x50] sm:$0x3] %vm879, %v867
  %901 = vst.msk [vmem:[%s2 + $0x52] sm:$0x3] %vm879, %v868
  %902 = vst.msk [vmem:[%s2 + $0x54] sm:$0x3] %vm879, %v869
  %903 = vst.msk [vmem:[%s2 + $0x56] sm:$0x3] %vm879, %v870
  %904 = vst.msk [vmem:[%s2 + $0x60] sm:$0x3] %vm879, %v871
  %905 = vst.msk [vmem:[%s2 + $0x62] sm:$0x3] %vm879, %v872
  %906 = vst.msk [vmem:[%s2 + $0x64] sm:$0x3] %vm879, %v873
  %907 = vst.msk [vmem:[%s2 + $0x66] sm:$0x3] %vm879, %v874
  %908 = vst.msk [vmem:[%s2 + $0x70] sm:$0x3] %vm879, %v875
  %909 = vst.msk [vmem:[%s2 + $0x72] sm:$0x3] %vm879, %v876
  %910 = vst.msk [vmem:[%s2 + $0x74] sm:$0x3] %vm879, %v877
  %911 = vst.msk [vmem:[%s2 + $0x76] sm:$0x3] %vm879, %v878
  %s912 = scalar_lea.vmem %s2, 8
  %913 = vst.msk [vmem:[%s912] sm:$0x3] %vm879, 0.0
  %914 = vst.msk [vmem:[%s912 + $0x2] sm:$0x3] %vm879, 0.0
  %915 = vst.msk [vmem:[%s912 + $0x4] sm:$0x3] %vm879, 0.0
  %916 = vst.msk [vmem:[%s912 + $0x6] sm:$0x3] %vm879, 0.0
  %917 = vst.msk [vmem:[%s912 + $0x10] sm:$0x3] %vm879, 0.0
  %918 = vst.msk [vmem:[%s912 + $0x12] sm:$0x3] %vm879, 0.0
  %919 = vst.msk [vmem:[%s912 + $0x14] sm:$0x3] %vm879, 0.0
  %920 = vst.msk [vmem:[%s912 + $0x16] sm:$0x3] %vm879, 0.0
  %921 = vst.msk [vmem:[%s912 + $0x20] sm:$0x3] %vm879, 0.0
  %922 = vst.msk [vmem:[%s912 + $0x22] sm:$0x3] %vm879, 0.0
  %923 = vst.msk [vmem:[%s912 + $0x24] sm:$0x3] %vm879, 0.0
  %924 = vst.msk [vmem:[%s912 + $0x26] sm:$0x3] %vm879, 0.0
  %925 = vst.msk [vmem:[%s912 + $0x30] sm:$0x3] %vm879, 0.0
  %926 = vst.msk [vmem:[%s912 + $0x32] sm:$0x3] %vm879, 0.0
  %927 = vst.msk [vmem:[%s912 + $0x34] sm:$0x3] %vm879, 0.0
  %928 = vst.msk [vmem:[%s912 + $0x36] sm:$0x3] %vm879, 0.0
  %929 = vst.msk [vmem:[%s912 + $0x40] sm:$0x3] %vm879, 0.0
  %930 = vst.msk [vmem:[%s912 + $0x42] sm:$0x3] %vm879, 0.0
  %931 = vst.msk [vmem:[%s912 + $0x44] sm:$0x3] %vm879, 0.0
  %932 = vst.msk [vmem:[%s912 + $0x46] sm:$0x3] %vm879, 0.0
  %933 = vst.msk [vmem:[%s912 + $0x50] sm:$0x3] %vm879, 0.0
  %934 = vst.msk [vmem:[%s912 + $0x52] sm:$0x3] %vm879, 0.0
  %935 = vst.msk [vmem:[%s912 + $0x54] sm:$0x3] %vm879, 0.0
  %936 = vst.msk [vmem:[%s912 + $0x56] sm:$0x3] %vm879, 0.0
  %937 = vst.msk [vmem:[%s912 + $0x60] sm:$0x3] %vm879, 0.0
  %938 = vst.msk [vmem:[%s912 + $0x62] sm:$0x3] %vm879, 0.0
  %939 = vst.msk [vmem:[%s912 + $0x64] sm:$0x3] %vm879, 0.0
  %940 = vst.msk [vmem:[%s912 + $0x66] sm:$0x3] %vm879, 0.0
  %941 = vst.msk [vmem:[%s912 + $0x70] sm:$0x3] %vm879, 0.0
  %942 = vst.msk [vmem:[%s912 + $0x72] sm:$0x3] %vm879, 0.0
  %943 = vst.msk [vmem:[%s912 + $0x74] sm:$0x3] %vm879, 0.0
  %944 = vst.msk [vmem:[%s912 + $0x76] sm:$0x3] %vm879, 0.0
  // Predicated region
  $region10: #{tpu_custom_call.1} parent=0 // pred_check
    _
  $region11: #{tpu_custom_call.1} parent=0 // pred_check_branch
    %946 = sbr.rel (0) target = $region13
  $region12: #{tpu_custom_call.1} parent=0 // pred_region
    _
  $region13: #{tpu_custom_call.1} parent=0 // pred_fallthru
    _
  // Predicated region
  $region14: #{tpu_custom_call.1} parent=0 // pred_check
    _
  $region15: #{tpu_custom_call.1} parent=0 // pred_check_branch
    %948 = sbr.rel (0) target = $region17
  $region16: #{tpu_custom_call.1} parent=0 // pred_region
    _
  $region17: #{tpu_custom_call.1} parent=0 // pred_fallthru
    _

</llo_original>
